<compile_context>
chip_gen: v5e
topology: v5e:2x2
jax: 0.10.0
libtpu: 0.0.40
codegen_flags: <defaults>
</compile_context>

<pallas_src>
import functools
import math

import jax
import jax.numpy as jnp
from jax.experimental import pallas as pl
from jax.experimental.pallas import tpu as pltpu

_VMEM = pl.BlockSpec(memory_space=pltpu.MemorySpace.VMEM)
_CPARAMS = pltpu.CompilerParams(vmem_limit_bytes=32 * 1024 * 1024)


# ----------------------------------------------------------------------------
# In-kernel helpers (traced inside Pallas bodies)
# ----------------------------------------------------------------------------
def _ln_f32(x, g, b, eps=1e-5):
    mu = jnp.mean(x, axis=-1, keepdims=True)
    var = jnp.mean(jnp.square(x - mu), axis=-1, keepdims=True)
    return (x - mu) * jax.lax.rsqrt(var + eps) * g + b


# ----------------------------------------------------------------------------
# Pallas kernels
# ----------------------------------------------------------------------------
def _embed_ln_kernel(x_ref, g_ref, b_ref, o_ref):
    """LayerNorm with no residual (embedding LN) -- f32 math, bf16 out."""
    x = x_ref[...].astype(jnp.float32)
    y = _ln_f32(x, g_ref[...].astype(jnp.float32), b_ref[...].astype(jnp.float32))
    o_ref[...] = y.astype(o_ref.dtype)


def _layer_kernel(x_ref, wqkv_ref, bqkv_ref, wo_ref, bo_ref, g1_ref, b1_ref,
                  wi_ref, bi_ref, wo2_ref, bo2_ref, g2_ref, b2_ref, bias_ref,
                  o_ref, *, heads, head_dim, hidden):
    """One fused encoder layer:
    QKV -> per-head attention -> out proj -> residual+LN -> FFN -> residual+LN."""
    x_bf = x_ref[...]                                   # (M, H) bf16
    x_f32 = x_bf.astype(jnp.float32)

    # ---- self-attention -----------------------------------------------------
    qkv = jnp.dot(x_bf, wqkv_ref[...], preferred_element_type=jnp.float32)
    qkv = qkv + bqkv_ref[...].astype(jnp.float32)       # (M, 3H) f32
    q = qkv[:, 0:hidden]
    k = qkv[:, hidden:2 * hidden]
    v = qkv[:, 2 * hidden:3 * hidden]

    bias = bias_ref[...]                                # (M, M) f32 additive mask
    scale = jnp.float32(1.0 / math.sqrt(head_dim))

    # Per-head attention with the batch dim collapsed into M (block-diagonal
    # bias keeps batches independent).  Output projection accumulated per head:
    #   concat_h(o_h) @ Wo == sum_h o_h @ Wo[h*d:(h+1)*d, :].
    acc = jnp.zeros_like(x_f32)                         # (M, H) f32
    for h in range(heads):
        lo = h * head_dim
        qh = q[:, lo:lo + head_dim].astype(jnp.bfloat16)
        kh = k[:, lo:lo + head_dim].astype(jnp.bfloat16)
        vh = v[:, lo:lo + head_dim].astype(jnp.bfloat16)

        s = jax.lax.dot_general(qh, kh, (((1,), (1,)), ((), ())),
                                preferred_element_type=jnp.float32)
        s = s * scale + bias                            # (M, M) f32
        m = jnp.max(s, axis=-1, keepdims=True)
        p = jnp.exp(s - m)
        denom = jnp.sum(p, axis=-1, keepdims=True)
        p = p * pl.reciprocal(denom, approx=True)       # EUP reciprocal

        oh = jnp.dot(p.astype(jnp.bfloat16), vh,
                     preferred_element_type=jnp.float32)        # (M, d)
        acc = acc + jnp.dot(oh.astype(jnp.bfloat16),
                            wo_ref[lo:lo + head_dim, :],
                            preferred_element_type=jnp.float32)  # (M, H)

    y = acc + bo_ref[...].astype(jnp.float32) + x_f32   # out-proj bias + residual
    y = _ln_f32(y, g1_ref[...].astype(jnp.float32), b1_ref[...].astype(jnp.float32))

    # ---- feed-forward --------------------------------------------------------
    y_bf = y.astype(jnp.bfloat16)
    hdn = jnp.dot(y_bf, wi_ref[...], preferred_element_type=jnp.float32)
    hdn = hdn + bi_ref[...].astype(jnp.float32)
    # TODO(synk): RoBERTa uses exact (erf) GELU; tanh approximation used here.
    hdn = jax.nn.gelu(hdn, approximate=True)

    z = jnp.dot(hdn.astype(jnp.bfloat16), wo2_ref[...],
                preferred_element_type=jnp.float32)
    z = z + bo2_ref[...].astype(jnp.float32) + y
    z = _ln_f32(z, g2_ref[...].astype(jnp.float32), b2_ref[...].astype(jnp.float32))
    o_ref[...] = z.astype(o_ref.dtype)


def _classifier_kernel(x_ref, w_ref, b_ref, o_ref):
    """Classifier head; output padded to 128 lanes (lane-dense store)."""
    y = jnp.dot(x_ref[...], w_ref[...], preferred_element_type=jnp.float32)
    o_ref[...] = y + b_ref[...].astype(jnp.float32)


# ----------------------------------------------------------------------------
# Wrappers
# ----------------------------------------------------------------------------
def pallas_embed_layernorm(x, gamma, beta):
    M, H = x.shape
    return pl.pallas_call(
        _embed_ln_kernel,
        out_shape=jax.ShapeDtypeStruct((M, H), jnp.bfloat16),
        in_specs=[_VMEM, _VMEM, _VMEM],
        out_specs=_VMEM,
        compiler_params=_CPARAMS,
    )(x, gamma.reshape(1, H), beta.reshape(1, H))


def pallas_encoder_layer(x, bias, layer, *, heads, head_dim):
    M, H = x.shape
    return pl.pallas_call(
        functools.partial(_layer_kernel, heads=heads, head_dim=head_dim, hidden=H),
        out_shape=jax.ShapeDtypeStruct((M, H), jnp.bfloat16),
        in_specs=[_VMEM] * 14,
        out_specs=_VMEM,
        compiler_params=_CPARAMS,
    )(x,
      layer["wqkv"], layer["bqkv"].reshape(1, -1),
      layer["wo"], layer["bo"].reshape(1, -1),
      layer["ln1_g"].reshape(1, H), layer["ln1_b"].reshape(1, H),
      layer["wi"], layer["bi"].reshape(1, -1),
      layer["wo2"], layer["bo2"].reshape(1, -1),
      layer["ln2_g"].reshape(1, H), layer["ln2_b"].reshape(1, H),
      bias)


def pallas_classifier(x, w_pad, b_pad):
    B, _ = x.shape
    N = w_pad.shape[1]
    return pl.pallas_call(
        _classifier_kernel,
        out_shape=jax.ShapeDtypeStruct((B, N), jnp.float32),
        in_specs=[_VMEM, _VMEM, _VMEM],
        out_specs=_VMEM,
        compiler_params=_CPARAMS,
    )(x, w_pad, b_pad)


# ----------------------------------------------------------------------------
# Parameters (deterministic synthetic init, bf16 weights / f32 norms+biases)
# ----------------------------------------------------------------------------
def init_params(key, *, vocab, max_pos, hidden, layers, intermediate, num_classes,
                cls_pad=128):
    def nrm(k, shape):
        return (jax.random.normal(k, shape, jnp.float32) * 0.02).astype(jnp.bfloat16)

    keys = iter(jax.random.split(key, 8 + layers * 8))
    cls_w = nrm(next(keys), (hidden, num_classes)).astype(jnp.float32)
    cls_w_pad = jnp.zeros((hidden, cls_pad), jnp.float32).at[:, :num_classes].set(cls_w)
    params = {
        "word_emb": nrm(next(keys), (vocab, hidden)).astype(jnp.float32),
        "pos_emb": nrm(next(keys), (max_pos, hidden)).astype(jnp.float32),
        "type_emb": nrm(next(keys), (1, hidden)).astype(jnp.float32),
        "emb_ln_g": jnp.ones((hidden,), jnp.float32),
        "emb_ln_b": jnp.zeros((hidden,), jnp.float32),
        "cls_w_pad": cls_w_pad.astype(jnp.bfloat16),
        "cls_b_pad": jnp.zeros((1, cls_pad), jnp.float32),
        "layers": [],
    }
    for _ in range(layers):
        wq = nrm(next(keys), (hidden, hidden))
        wk = nrm(next(keys), (hidden, hidden))
        wv = nrm(next(keys), (hidden, hidden))
        params["layers"].append({
            "wqkv": jnp.concatenate([wq, wk, wv], axis=1),            # (H, 3H) bf16
            "bqkv": jnp.zeros((3 * hidden,), jnp.float32),
            "wo": nrm(next(keys), (hidden, hidden)),
            "bo": jnp.zeros((hidden,), jnp.float32),
            "ln1_g": jnp.ones((hidden,), jnp.float32),
            "ln1_b": jnp.zeros((hidden,), jnp.float32),
            "wi": nrm(next(keys), (hidden, intermediate)),
            "bi": jnp.zeros((intermediate,), jnp.float32),
            "wo2": nrm(next(keys), (intermediate, hidden)),
            "bo2": jnp.zeros((hidden,), jnp.float32),
            "ln2_g": jnp.ones((hidden,), jnp.float32),
            "ln2_b": jnp.zeros((hidden,), jnp.float32),
        })
    return params


# ----------------------------------------------------------------------------
# Forward pass (mirrors RobertaClassifier.forward)
# ----------------------------------------------------------------------------
def roberta_classifier_forward(params, input_ids, attention_mask, *, heads, num_classes):
    B, S = input_ids.shape
    H = params["word_emb"].shape[1]
    d = H // heads

    # --- embeddings (gather is glue) + embedding LayerNorm (Pallas, no residual) ---
    # TODO(synk): real RoBERTa offsets position ids by padding_idx+1; plain arange used.
    pos_ids = jnp.arange(S)
    x = (params["word_emb"][input_ids]
         + params["pos_emb"][pos_ids][None, :, :]
         + params["type_emb"][0][None, None, :])
    x2d = pallas_embed_layernorm(x.reshape(B * S, H).astype(jnp.float32),
                                 params["emb_ln_g"], params["emb_ln_b"])  # bf16

    # Additive attention bias built ONCE: block-diagonal over batches + key padding.
    tok_batch = jnp.repeat(jnp.arange(B), S)                       # (B*S,)
    same_batch = tok_batch[:, None] == tok_batch[None, :]
    key_valid = attention_mask.reshape(B * S) > 0
    bias = jnp.where(same_batch & key_valid[None, :], 0.0, -1e9).astype(jnp.float32)

    for layer in params["layers"]:
        x2d = pallas_encoder_layer(x2d, bias, layer, heads=heads, head_dim=d)

    sequence_output = x2d.reshape(B, S, H)[:, 0, :]   # outputs[0][:, 0, :]  (CLS token)
    # nn.Dropout(0.3) is identity at inference time.
    logits_pad = pallas_classifier(sequence_output, params["cls_w_pad"], params["cls_b_pad"])
    return logits_pad[:, :num_classes]                # slice the real logits in glue


# ----------------------------------------------------------------------------
if __name__ == "__main__":
    B, S = 2, 8
    HIDDEN, HEADS, INTER, LAYERS = 768, 12, 3072, 2
    VOCAB, MAX_POS, NUM_CLASSES = 128, 64, 3

    root = jax.random.PRNGKey(0)
    k_params, k_ids = jax.random.split(root)

    params = init_params(k_params, vocab=VOCAB, max_pos=MAX_POS, hidden=HIDDEN,
                         layers=LAYERS, intermediate=INTER, num_classes=NUM_CLASSES)

    input_ids = jax.random.randint(k_ids, (B, S), 0, VOCAB, dtype=jnp.int32)
    attention_mask = jnp.array([[1, 1, 1, 1, 1, 1, 1, 1],
                                [1, 1, 1, 1, 1, 0, 0, 0]], dtype=jnp.int32)

    logits = roberta_classifier_forward(params, input_ids, attention_mask,
                                        heads=HEADS, num_classes=NUM_CLASSES)
    logits = jax.block_until_ready(logits)
    assert logits.shape == (B, NUM_CLASSES) and bool(jnp.all(jnp.isfinite(logits)))
    print("KERNEL_OK")
</pallas_src>

<mosaic_0001>
module attributes {stable_mosaic.version = 11 : i64} {
  func.func @_embed_ln_kernel(%arg0: memref<16x768xf32, #tpu.memory_space<vmem>>, %arg1: memref<1x768xf32, #tpu.memory_space<vmem>>, %arg2: memref<1x768xf32, #tpu.memory_space<vmem>>, %arg3: memref<16x768xbf16, #tpu.memory_space<vmem>>) attributes {dimension_semantics = [], scalar_prefetch = 0 : i64, scratch_operands = 0 : i64, tpu.core_type = #tpu.core_type<tc>} {
    %c0 = arith.constant 0 : index
    %c0_0 = arith.constant 0 : index
    %0 = vector.load %arg0[%c0, %c0_0] : memref<16x768xf32, #tpu.memory_space<vmem>>, vector<16x768xf32>
    %c0_1 = arith.constant 0 : index
    %c0_2 = arith.constant 0 : index
    %1 = vector.load %arg1[%c0_1, %c0_2] : memref<1x768xf32, #tpu.memory_space<vmem>>, vector<1x768xf32>
    %c0_3 = arith.constant 0 : index
    %c0_4 = arith.constant 0 : index
    %2 = vector.load %arg2[%c0_3, %c0_4] : memref<1x768xf32, #tpu.memory_space<vmem>>, vector<1x768xf32>
    %cst = arith.constant dense<0.000000e+00> : vector<16xf32>
    %3 = vector.multi_reduction <add>, %0, %cst [1] : vector<16x768xf32> to vector<16xf32>
    %4 = vector.shape_cast %3 : vector<16xf32> to vector<16x1xf32>
    %cst_5 = arith.constant 7.680000e+02 : f32
    %5 = vector.broadcast %cst_5 : f32 to vector<16x1xf32>
    %6 = arith.divf %4, %5 : vector<16x1xf32>
    %7 = vector.broadcast %6 : vector<16x1xf32> to vector<16x768xf32>
    %8 = arith.subf %0, %7 : vector<16x768xf32>
    %9 = arith.mulf %8, %8 : vector<16x768xf32>
    %cst_6 = arith.constant dense<0.000000e+00> : vector<16xf32>
    %10 = vector.multi_reduction <add>, %9, %cst_6 [1] : vector<16x768xf32> to vector<16xf32>
    %11 = vector.shape_cast %10 : vector<16xf32> to vector<16x1xf32>
    %cst_7 = arith.constant 7.680000e+02 : f32
    %12 = vector.broadcast %cst_7 : f32 to vector<16x1xf32>
    %13 = arith.divf %11, %12 : vector<16x1xf32>
    %14 = vector.broadcast %6 : vector<16x1xf32> to vector<16x768xf32>
    %15 = arith.subf %0, %14 : vector<16x768xf32>
    %cst_8 = arith.constant 9.99999974E-6 : f32
    %16 = vector.broadcast %cst_8 : f32 to vector<16x1xf32>
    %17 = arith.addf %13, %16 : vector<16x1xf32>
    %18 = math.rsqrt %17 : vector<16x1xf32>
    %19 = vector.broadcast %18 : vector<16x1xf32> to vector<16x768xf32>
    %20 = arith.mulf %15, %19 : vector<16x768xf32>
    %21 = vector.broadcast %1 : vector<1x768xf32> to vector<16x768xf32>
    %22 = arith.mulf %20, %21 : vector<16x768xf32>
    %23 = vector.broadcast %2 : vector<1x768xf32> to vector<16x768xf32>
    %24 = arith.addf %22, %23 : vector<16x768xf32>
    %25 = arith.truncf %24 : vector<16x768xf32> to vector<16x768xbf16>
    %c0_9 = arith.constant 0 : index
    %c0_10 = arith.constant 0 : index
    %26 = vector.load %arg3[%c0_9, %c0_10] : memref<16x768xbf16, #tpu.memory_space<vmem>>, vector<16x768xbf16>
    tpu.vector_store %arg3[%c0_9, %c0_10], %25 {strides = array<i32>} : memref<16x768xbf16, #tpu.memory_space<vmem>>, vector<16x768xbf16>,
    return
  }
}

</mosaic_0001>

<llo_original>
// kernel: tpu_custom_call.1
$region0: #{tpu_custom_call.1}
  #allocation0 [shape = 'u32[]', space=smem, size = 0x4, offset = 0x4, fixed_abs, tag = 'smem constant byte address 0x4 - core index']
  #allocation1 [shape = 'u32[72,128]{1,0:T(1,128)}', space=vmem, size = 0x9000, scoped, tag = 'internal scratch']
  %s0 = inlined_call_operand.hbm [shape: f32[16,768], index: 0, kind: input, shape index: {}]
  %s1 = inlined_call_operand.hbm [shape: f32[1,768], index: 1, kind: input, shape index: {}]
  %s2 = inlined_call_operand.hbm [shape: f32[1,768], index: 2, kind: input, shape index: {}]
  %s3 = inlined_call_operand.hbm [shape: bf16[16,768], index: 3, kind: output, shape index: {}]
  %s4 = sld [smem:[#allocation0]]
  $region34: #{tpu_custom_call.1} parent=0
    _
  %s6 = ssub.s32 1, %s4
  %s7 = scalar_select 0, %s6, %s4
  $region1: #{tpu_custom_call.1} parent=0
    #allocation2 [shape = 'u8[49152]{0}', space=vmem, size = 0xc000, scoped, tag = 'input window, operand 0, single buffered']
    #allocation3 [shape = 's32[1]{0}', space=sflag, size = 0x4, scoped, tag = 'scoped memory for tpu_custom_call.1']
    #allocation4 [shape = 's32[1]{0}', space=sflag, size = 0x4, scoped, tag = 'scoped memory for tpu_custom_call.1']
    #allocation5 [shape = 'u8[3072]{0}', space=vmem, size = 0xc00, scoped, tag = 'input window, operand 1, single buffered']
    #allocation6 [shape = 's32[1]{0}', space=sflag, size = 0x4, scoped, tag = 'scoped memory for tpu_custom_call.1']
    #allocation7 [shape = 'u8[3072]{0}', space=vmem, size = 0xc00, scoped, tag = 'input window, operand 2, single buffered']
    #allocation8 [shape = 'u8[24576]{0}', space=vmem, size = 0x6000, scoped, tag = 'output window, operand 0, single buffered']
    %8 = vsyncpa [#allocation3], 0
    %9 = vsyncpa [#allocation6], 0
    %10 = vsyncpa [#allocation4], 0
    // Predicated region
    $region2: #{tpu_custom_call.1} parent=1 // pred_check
      _
    $region3: #{tpu_custom_call.1} parent=1 // pred_check_branch
      %12 = sbr.rel (0) target = $region5
    $region4: #{tpu_custom_call.1} parent=1 // pred_region
      %14 = vsyncadd [#allocation3], 0
      %s15 = sshll.u32 %s0, 4
      %s16 = int_to_ptr.hbm [resolvable:$true] %s15
      %s17 = sshll.u32 [#allocation2], 4
      %s18 = int_to_ptr.vmem [resolvable:$true] %s17
      %23 = dma.hbm_to_vmem [thread:$0]  %s16, 1536, %s18, [#allocation3], 768, 768, 48
    $region5: #{tpu_custom_call.1} parent=1 // pred_fallthru
      _
    // Predicated region
    $region6: #{tpu_custom_call.1} parent=1 // pred_check
      _
    $region7: #{tpu_custom_call.1} parent=1 // pred_check_branch
      %25 = sbr.rel (0) target = $region9
    $region8: #{tpu_custom_call.1} parent=1 // pred_region
      %27 = vsyncadd [#allocation6], 0
      %s29 = sshll.u32 %s1, 4
      %s30 = int_to_ptr.hbm [resolvable:$true] %s29
      %s31 = sshll.u32 [#allocation5], 4
      %s32 = int_to_ptr.vmem [resolvable:$true] %s31
      %34 = dma.hbm_to_vmem [thread:$0]  %s30, 96, %s32, [#allocation6]
    $region9: #{tpu_custom_call.1} parent=1 // pred_fallthru
      _
    // Predicated region
    $region10: #{tpu_custom_call.1} parent=1 // pred_check
      _
    $region11: #{tpu_custom_call.1} parent=1 // pred_check_branch
      %36 = sbr.rel (0) target = $region13
    $region12: #{tpu_custom_call.1} parent=1 // pred_region
      %38 = vsyncadd [#allocation6], 0
      %s40 = sshll.u32 %s2, 4
      %s41 = int_to_ptr.hbm [resolvable:$true] %s40
      %s42 = sshll.u32 [#allocation7], 4
      %s43 = int_to_ptr.vmem [resolvable:$true] %s42
      %45 = dma.hbm_to_vmem [thread:$0]  %s41, 96, %s43, [#allocation6]
    $region13: #{tpu_custom_call.1} parent=1 // pred_fallthru
      _
    // Predicated region
    $region14: #{tpu_custom_call.1} parent=1 // pred_check
      _
    $region15: #{tpu_custom_call.1} parent=1 // pred_check_branch
      %47 = sbr.rel (0) target = $region17
    $region16: #{tpu_custom_call.1} parent=1 // pred_region
      %49 = dma.done [#allocation3], 1536
    $region17: #{tpu_custom_call.1} parent=1 // pred_fallthru
      _
    // Predicated region
    $region18: #{tpu_custom_call.1} parent=1 // pred_check
      _
    $region19: #{tpu_custom_call.1} parent=1 // pred_check_branch
      %51 = sbr.rel (0) target = $region21
    $region20: #{tpu_custom_call.1} parent=1 // pred_region
      %53 = dma.done [#allocation6], 96
    $region21: #{tpu_custom_call.1} parent=1 // pred_fallthru
      _
    // Predicated region
    $region22: #{tpu_custom_call.1} parent=1 // pred_check
      _
    $region23: #{tpu_custom_call.1} parent=1 // pred_check_branch
      %55 = sbr.rel (0) target = $region25
    $region24: #{tpu_custom_call.1} parent=1 // pred_region
      %57 = dma.done [#allocation6], 96
    $region25: #{tpu_custom_call.1} parent=1 // pred_fallthru
      _
    %v58 = vld [vmem:[#allocation2] sm:$0xff]
    %v59 = vld [vmem:[#allocation2 + $0x8] sm:$0xff]
    %v60 = vld [vmem:[#allocation2 + $0x10] sm:$0xff]
    %v61 = vld [vmem:[#allocation2 + $0x18] sm:$0xff]
    %v62 = vld [vmem:[#allocation2 + $0x20] sm:$0xff]
    %v63 = vld [vmem:[#allocation2 + $0x28] sm:$0xff]
    %v64 = vld [vmem:[#allocation2 + $0x30] sm:$0xff]
    %v65 = vld [vmem:[#allocation2 + $0x38] sm:$0xff]
    %v66 = vld [vmem:[#allocation2 + $0x40] sm:$0xff]
    %v67 = vld [vmem:[#allocation2 + $0x48] sm:$0xff]
    %v68 = vld [vmem:[#allocation2 + $0x50] sm:$0xff]
    %v69 = vld [vmem:[#allocation2 + $0x58] sm:$0xff]
    %v70 = vld [vmem:[#allocation5] sm:$0x3f]
    %v71 = vld [vmem:[#allocation7] sm:$0x3f]
    %v72 = vadd.f32 %v58, %v59
    %v73 = vadd.f32 %v72, %v60
    %v74 = vadd.f32 %v73, %v61
    %v75 = vadd.f32 %v74, %v62
    %v76 = vadd.f32 %v75, %v63
    %77 = vadd.xlane.f32.xlu0 %v76
    %v78 = vpop.xlane.xlu0 %77
    %v79 = vadd.f32 %v64, %v65
    %v80 = vadd.f32 %v79, %v66
    %v81 = vadd.f32 %v80, %v67
    %v82 = vadd.f32 %v81, %v68
    %v83 = vadd.f32 %v82, %v69
    %84 = vadd.xlane.f32.xlu0 %v83
    %v85 = vpop.xlane.xlu0 %84
    %v86 = vrcp.pop 768.0
    %v87 = vmul.f32 768.0, %v86
    %v88 = vsub.f32 1.0, %v87
    %v89 = vmul.f32 %v86, %v88
    %v90 = vadd.f32 %v86, %v89
    %vm91 = vweird.f32 %v86
    %v92 = vsel %vm91, %v86, %v90
    %v93 = vmul.f32 %v78, %v92
    %v94 = vmul.f32 %v85, %v92
    %v95 = vsub.f32 %v58, %v93
    %v96 = vsub.f32 %v59, %v93
    %v97 = vsub.f32 %v60, %v93
    %v98 = vsub.f32 %v61, %v93
    %v99 = vsub.f32 %v62, %v93
    %v100 = vsub.f32 %v63, %v93
    %v101 = vsub.f32 %v64, %v94
    %v102 = vsub.f32 %v65, %v94
    %v103 = vsub.f32 %v66, %v94
    %v104 = vsub.f32 %v67, %v94
    %v105 = vsub.f32 %v68, %v94
    %v106 = vsub.f32 %v69, %v94
    %v107 = vmul.f32 %v95, %v95
    %v108 = vmul.f32 %v96, %v96
    %v109 = vmul.f32 %v97, %v97
    %v110 = vmul.f32 %v98, %v98
    %v111 = vmul.f32 %v99, %v99
    %v112 = vmul.f32 %v100, %v100
    %v113 = vmul.f32 %v101, %v101
    %v114 = vmul.f32 %v102, %v102
    %v115 = vmul.f32 %v103, %v103
    %v116 = vmul.f32 %v104, %v104
    %v117 = vmul.f32 %v105, %v105
    %v118 = vmul.f32 %v106, %v106
    %v119 = vadd.f32 %v107, %v108
    %v120 = vadd.f32 %v119, %v109
    %v121 = vadd.f32 %v120, %v110
    %v122 = vadd.f32 %v121, %v111
    %v123 = vadd.f32 %v122, %v112
    %124 = vadd.xlane.f32.xlu0 %v123
    %v125 = vpop.xlane.xlu0 %124
    %v126 = vadd.f32 %v113, %v114
    %v127 = vadd.f32 %v126, %v115
    %v128 = vadd.f32 %v127, %v116
    %v129 = vadd.f32 %v128, %v117
    %v130 = vadd.f32 %v129, %v118
    %131 = vadd.xlane.f32.xlu0 %v130
    %v132 = vpop.xlane.xlu0 %131
    %v133 = vmul.f32 %v125, %v92
    %v134 = vmul.f32 %v132, %v92
    %v135 = vadd.f32 %v133, 1e-05
    %v136 = vadd.f32 %v134, 1e-05
    %v137 = vrsqrt.pop %v135
    %v138 = vmul.f32 %v137, %v135
    %v139 = vmul.f32 %v138, %v137
    %v140 = vmul.f32 0.5, %v139
    %v141 = vsub.f32 1.5, %v140
    %v142 = vmul.f32 %v137, %v141
    %vm143 = vweird.f32 %v135
    %vm144 = vweird.f32 %v137
    %vm145 = vmor %vm143, %vm144
    %v146 = vsel %vm145, %v137, %v142
    %v147 = vrsqrt.pop %v136
    %v148 = vmul.f32 %v147, %v136
    %v149 = vmul.f32 %v148, %v147
    %v150 = vmul.f32 0.5, %v149
    %v151 = vsub.f32 1.5, %v150
    %v152 = vmul.f32 %v147, %v151
    %vm153 = vweird.f32 %v136
    %vm154 = vweird.f32 %v147
    %vm155 = vmor %vm153, %vm154
    %v156 = vsel %vm155, %v147, %v152
    %v157 = vmul.f32 %v95, %v146
    %v158 = vmul.f32 %v96, %v146
    %v159 = vmul.f32 %v97, %v146
    %v160 = vmul.f32 %v98, %v146
    %v161 = vmul.f32 %v99, %v146
    %v162 = vmul.f32 %v100, %v146
    %v163 = vmul.f32 %v101, %v156
    %v164 = vmul.f32 %v102, %v156
    %v165 = vmul.f32 %v103, %v156
    %v166 = vmul.f32 %v104, %v156
    %v167 = vmul.f32 %v105, %v156
    %v168 = vmul.f32 %v106, %v156
    %v170 = vperm.slane %v70, 0
    %v171 = vperm.slane %v70, 1
    %v172 = vperm.slane %v70, 2
    %v173 = vperm.slane %v70, 3
    %v174 = vperm.slane %v70, 4
    %v175 = vperm.slane %v70, 5
    %v182 = vmul.f32 %v157, %v170
    %v183 = vmul.f32 %v158, %v171
    %v184 = vmul.f32 %v159, %v172
    %v185 = vmul.f32 %v160, %v173
    %v186 = vmul.f32 %v161, %v174
    %v187 = vmul.f32 %v162, %v175
    %v188 = vmul.f32 %v163, %v170
    %v189 = vmul.f32 %v164, %v171
    %v190 = vmul.f32 %v165, %v172
    %v191 = vmul.f32 %v166, %v173
    %v192 = vmul.f32 %v167, %v174
    %v193 = vmul.f32 %v168, %v175
    %v195 = vperm.slane %v71, 0
    %v196 = vperm.slane %v71, 1
    %v197 = vperm.slane %v71, 2
    %v198 = vperm.slane %v71, 3
    %v199 = vperm.slane %v71, 4
    %v200 = vperm.slane %v71, 5
    %v207 = vadd.f32 %v182, %v195
    %v208 = vadd.f32 %v183, %v196
    %v209 = vadd.f32 %v184, %v197
    %v210 = vadd.f32 %v185, %v198
    %v211 = vadd.f32 %v186, %v199
    %v212 = vadd.f32 %v187, %v200
    %v213 = vadd.f32 %v188, %v195
    %v214 = vadd.f32 %v189, %v196
    %v215 = vadd.f32 %v190, %v197
    %v216 = vadd.f32 %v191, %v198
    %v217 = vadd.f32 %v192, %v199
    %v218 = vadd.f32 %v193, %v200
    %v219 = vpack.c.bf16 %v208, %v207
    %v220 = vpack.c.bf16 %v210, %v209
    %v221 = vpack.c.bf16 %v212, %v211
    %v222 = vpack.c.bf16 %v214, %v213
    %v223 = vpack.c.bf16 %v216, %v215
    %v224 = vpack.c.bf16 %v218, %v217
    %225 = vst [vmem:[#allocation8] sm:$0xff] %v219
    %226 = vst [vmem:[#allocation8 + $0x8] sm:$0xff] %v220
    %227 = vst [vmem:[#allocation8 + $0x10] sm:$0xff] %v221
    %228 = vst [vmem:[#allocation8 + $0x18] sm:$0xff] %v222
    %229 = vst [vmem:[#allocation8 + $0x20] sm:$0xff] %v223
    %230 = vst [vmem:[#allocation8 + $0x28] sm:$0xff] %v224
    // Predicated region
    $region26: #{tpu_custom_call.1} parent=1 // pred_check
      _
    $region27: #{tpu_custom_call.1} parent=1 // pred_check_branch
      %232 = sbr.rel (0) target = $region29
    $region28: #{tpu_custom_call.1} parent=1 // pred_region
      %234 = vsyncadd [#allocation4], 0
      %s235 = sshll.u32 [#allocation8], 4
      %s236 = int_to_ptr.vmem [resolvable:$true] %s235
      %s237 = sshll.u32 %s3, 4
      %s238 = int_to_ptr.hbm [resolvable:$true] %s237
      %243 = dma.vmem_to_hbm [thread:$0]  %s236, 768, %s238, [#allocation4], 384, 384, 24
    $region29: #{tpu_custom_call.1} parent=1 // pred_fallthru
      _
    // Predicated region
    $region30: #{tpu_custom_call.1} parent=1 // pred_check
      _
    $region31: #{tpu_custom_call.1} parent=1 // pred_check_branch
      %245 = sbr.rel (0) target = $region33
    $region32: #{tpu_custom_call.1} parent=1 // pred_region
      %247 = dma.done [#allocation4], 768
    $region33: #{tpu_custom_call.1} parent=1 // pred_fallthru
      _
    %248 = vsyncpa [#allocation3], 1
    %249 = vsyncpa [#allocation6], 1
    %250 = vsyncpa [#allocation4], 1

</llo_original>
